<compile_context>
chip_gen: v7x
topology: tpu7x:2x2x1
jax: 0.10.0
libtpu: 0.0.40
codegen_flags: <defaults>
</compile_context>

<pallas_src>
import jax
import jax.numpy as jnp
from jax.experimental import pallas as pl
from jax.experimental.pallas import tpu as pltpu

NEG_SLOPE = 0.01      # PyTorch LeakyReLU default negative_slope
D_OUT = 1024
ROWS_TARGET = 2048    # MXU rows per grid step (review: cap ~2048 for v7x; fine on v5e/v6e)
COL_CHUNK = 256       # fc3 output columns per in-kernel chunk
CIN_PAD = 8           # fc1 input channels zero-padded 3 -> 8 (MXU-friendly contraction)


def _leaky_relu(x):
    return jnp.where(x > 0, x, NEG_SLOPE * x)


def _round_up(v, m):
    return (v + m - 1) // m * m


def _make_kernel(TB, TN, CG, CC):
    rows = TB * TN
    n_cc = CG // CC

    def kernel(x_ref, w1_ref, b1_ref, w2_ref, b2_ref, w3_ref, b3_ref, o_ref):
        ni = pl.program_id(2)

        # ---- init the running-max accumulator (output block is resident across ni) ----
        @pl.when(ni == 0)
        def _():
            o_ref[...] = jnp.full(o_ref.shape, -jnp.inf, dtype=o_ref.dtype)

        # ---- fc1 (8 -> 64) on the MXU (channels zero-padded, so result == 3 -> 64) ----
        x = x_ref[...].reshape(rows, CIN_PAD)              # free reshape (TN % 8 == 0)
        h1 = jnp.dot(x, w1_ref[...], preferred_element_type=jnp.float32)
        h1 = _leaky_relu(h1 + b1_ref[...])                 # (rows, 64) f32

        # ---- fc2 (64 -> 128): bf16 MXU matmul, f32 accumulation ----
        h2 = jnp.dot(h1.astype(jnp.bfloat16), w2_ref[...],
                     preferred_element_type=jnp.float32)
        h2 = _leaky_relu(h2 + b2_ref[...]).astype(jnp.bfloat16)   # (rows, 128) bf16

        # ---- fc3 (128 -> CG), tiled over CC-wide column chunks ----
        # Each chunk: dot -> per-batch max over the point axis -> running max straight
        # into the matching o_ref column slice. No (rows, CG) f32 intermediate.
        for c in range(n_cc):
            c0, c1 = c * CC, (c + 1) * CC
            d3 = jnp.dot(h2, w3_ref[:, c0:c1],
                         preferred_element_type=jnp.float32)       # (rows, CC) pre-bias
            cmax = jnp.max(d3.reshape(TB, TN, CC), axis=1)         # (TB, CC)
            o_ref[:, :, c0:c1] = jnp.maximum(o_ref[:, :, c0:c1], cmax[None])

        # ---- finalize: fc3 bias + LeakyReLU commute with max, applied once per tile ----
        @pl.when(ni == pl.num_programs(2) - 1)
        def _():
            o_ref[...] = _leaky_relu(o_ref[...] + b3_ref[...][None])

    return kernel


def osm_pool(x, params, *, rows_target=ROWS_TARGET):
    """x: (B, N, 3) float32. Returns (B, 1024) float32 (max over the N points)."""
    B, N, C = x.shape
    assert C == 3
    w1, b1, w2, b2, w3, b3 = params

    # ---- tile selection ----
    # Split N into near-equal point chunks (<= rows_target, multiple of 8) to minimize
    # padding, then pack batch elements so each grid step feeds ~rows_target MXU rows.
    n8 = _round_up(N, 8)
    n_point_chunks = -(-n8 // rows_target)
    TN = _round_up(-(-N // n_point_chunks), 8)
    TB = max(1, min(B, rows_target // TN))
    B_pad = _round_up(B, TB)
    N_pad = _round_up(N, TN)
    nb = B_pad // TB
    nn = N_pad // TN
    # Split fc3's 1024 output columns over a *parallel* grid axis only when there is a
    # single batch-grid step, so v7x's two TensorCores both get work even for B == 1.
    ncol = 2 if nb < 2 else 1
    CG = D_OUT // ncol
    CC = min(COL_CHUNK, CG)

    # ---- input prep ----
    xp = x.astype(jnp.float32)
    if N_pad != N:
        # Pad the point axis with copies of each batch's first point. Duplicates produce
        # exactly point 0's activations, so they never change the max -> no in-kernel mask.
        edge = jnp.broadcast_to(xp[:, :1, :], (B, N_pad - N, 3))
        xp = jnp.concatenate([xp, edge], axis=1)
    if B_pad != B:
        xp = jnp.pad(xp, ((0, B_pad - B), (0, 0), (0, 0)))  # garbage rows sliced off below
    xp = jnp.pad(xp, ((0, 0), (0, 0), (0, CIN_PAD - 3)))    # channels 3 -> 8 (zeros)
    # TODO(synk): lane-dense repack of x (e.g. (B, 3, N) layout) would make the x DMA
    # fully dense, but requires an in-kernel relayout before the flattened-row matmuls.

    w1p = jnp.pad(w1.astype(jnp.float32), ((0, CIN_PAD - 3), (0, 0)))   # (8, 64) f32
    w2b = w2.astype(jnp.bfloat16)
    w3b = w3.astype(jnp.bfloat16)

    kernel = _make_kernel(TB, TN, CG, CC)

    out = pl.pallas_call(
        kernel,
        out_shape=jax.ShapeDtypeStruct((nb, TB, D_OUT), jnp.float32),
        grid_spec=pltpu.PrefetchScalarGridSpec(
            num_scalar_prefetch=0,
            grid=(nb, ncol, nn),   # reduction (point-chunk) axis last
            in_specs=[
                pl.BlockSpec((TB, TN, CIN_PAD), lambda bi, ci, ni: (bi, ni, 0)),  # points
                pl.BlockSpec((CIN_PAD, 64), lambda bi, ci, ni: (0, 0)),   # fc1 W (f32)
                pl.BlockSpec((1, 64), lambda bi, ci, ni: (0, 0)),         # fc1 b
                pl.BlockSpec((64, 128), lambda bi, ci, ni: (0, 0)),       # fc2 W (bf16)
                pl.BlockSpec((1, 128), lambda bi, ci, ni: (0, 0)),        # fc2 b
                pl.BlockSpec((128, CG), lambda bi, ci, ni: (0, ci)),      # fc3 W cols (bf16)
                pl.BlockSpec((1, CG), lambda bi, ci, ni: (0, ci)),        # fc3 b cols
            ],
            # lane-dense (TB, CG) output slab, resident across the reduction axis
            out_specs=pl.BlockSpec((1, TB, CG), lambda bi, ci, ni: (bi, 0, ci)),
        ),
        compiler_params=pltpu.CompilerParams(
            dimension_semantics=("parallel", "parallel", "arbitrary"),
            vmem_limit_bytes=48 * 1024 * 1024,
        ),
    )(xp, w1p, b1.astype(jnp.float32), w2b, b2.astype(jnp.float32), w3b,
      b3.astype(jnp.float32))

    return out.reshape(B_pad, D_OUT)[:B]


def init_params(key):
    """Deterministic PyTorch-style Linear init: U(-1/sqrt(fan_in), 1/sqrt(fan_in))."""
    def linear(key, fan_in, fan_out):
        kw, kb = jax.random.split(key)
        bound = 1.0 / jnp.sqrt(jnp.float32(fan_in))
        w = jax.random.uniform(kw, (fan_in, fan_out), jnp.float32, -bound, bound)
        b = jax.random.uniform(kb, (1, fan_out), jnp.float32, -bound, bound)
        return w, b

    k1, k2, k3 = jax.random.split(key, 3)
    w1, b1 = linear(k1, 3, 64)
    w2, b2 = linear(k2, 64, 128)
    w3, b3 = linear(k3, 128, 1024)
    return (w1, b1, w2, b2, w3, b3)


def osm_pool_ref(x, params):
    """Plain-JAX f32 reference (matches the PyTorch forward)."""
    w1, b1, w2, b2, w3, b3 = params
    h1 = _leaky_relu(jnp.einsum("bnd,de->bne", x, w1) + b1)
    h2 = _leaky_relu(jnp.einsum("bnd,de->bne", h1, w2) + b2)
    h3 = _leaky_relu(jnp.einsum("bnd,de->bne", h2, w3) + b3)
    return jnp.max(h3, axis=1)


def _check(out, ref, name):
    assert out.shape == ref.shape, (name, out.shape, ref.shape)
    # bf16 MXU inputs -> relaxed tolerance vs the f32 reference.
    assert jnp.allclose(out, ref, atol=2e-2, rtol=2e-2), f"mismatch vs reference ({name})"


if __name__ == "__main__":
    key = jax.random.PRNGKey(0)
    kx, kx2, kx3, kx4, kp = jax.random.split(key, 5)
    params = init_params(kp)

    # Config 1: tiny shapes (batch=2, 8 trajectory points of 3 coords).
    x1 = jax.random.normal(kx, (2, 8, 3), jnp.float32)
    out1 = jax.block_until_ready(osm_pool(x1, params))
    _check(out1, osm_pool_ref(x1, params), "cfg1")

    # Config 2: exercises point-axis edge padding (B=3, N=20 -> N_pad=24).
    x2 = jax.random.normal(kx2, (3, 20, 3), jnp.float32)
    out2 = jax.block_until_ready(osm_pool(x2, params))
    _check(out2, osm_pool_ref(x2, params), "cfg2")

    # Config 3: small rows_target forces a multi-chunk reduction (nn>1), multiple batch
    # grid steps (nb>1) and the ncol=1 path (accumulator init/finalize across chunks).
    x3 = jax.random.normal(kx3, (5, 40, 3), jnp.float32)
    out3 = jax.block_until_ready(osm_pool(x3, params, rows_target=16))
    _check(out3, osm_pool_ref(x3, params), "cfg3")

    # Config 4: exercises batch padding (B=3, TB=2 -> B_pad=4) with zero-padded rows.
    x4 = jax.random.normal(kx4, (3, 8, 3), jnp.float32)
    out4 = jax.block_until_ready(osm_pool(x4, params, rows_target=16))
    _check(out4, osm_pool_ref(x4, params), "cfg4")

    print("KERNEL_OK")
</pallas_src>

<mosaic_0001>
module attributes {stable_mosaic.version = 11 : i64} {
  func.func @kernel(%arg0: i32, %arg1: i32, %arg2: i32, %arg3: memref<2x8x8xf32, #tpu.memory_space<vmem>>, %arg4: memref<8x64xf32, #tpu.memory_space<vmem>>, %arg5: memref<1x64xf32, #tpu.memory_space<vmem>>, %arg6: memref<64x128xbf16, #tpu.memory_space<vmem>>, %arg7: memref<1x128xf32, #tpu.memory_space<vmem>>, %arg8: memref<128x512xbf16, #tpu.memory_space<vmem>>, %arg9: memref<1x512xf32, #tpu.memory_space<vmem>>, %arg10: memref<1x2x512xf32, #tpu.memory_space<vmem>>) attributes {dimension_semantics = [#tpu.dimension_semantics<parallel>, #tpu.dimension_semantics<parallel>, #tpu.dimension_semantics<arbitrary>], iteration_bounds = array<i64: 1, 2, 1>, scalar_prefetch = 0 : i64, scratch_operands = 0 : i64, tpu.core_type = #tpu.core_type<tc>, window_params = [{transform_indices = @transform_0, window_bounds = array<i64: 2, 8, 8>}, {pipeline_mode = #tpu.pipeline_mode<synchronous>, transform_indices = @transform_1, window_bounds = array<i64: 8, 64>}, {pipeline_mode = #tpu.pipeline_mode<synchronous>, transform_indices = @transform_2, window_bounds = array<i64: 1, 64>}, {pipeline_mode = #tpu.pipeline_mode<synchronous>, transform_indices = @transform_3, window_bounds = array<i64: 64, 128>}, {pipeline_mode = #tpu.pipeline_mode<synchronous>, transform_indices = @transform_4, window_bounds = array<i64: 1, 128>}, {transform_indices = @transform_5, window_bounds = array<i64: 128, 512>}, {transform_indices = @transform_6, window_bounds = array<i64: 1, 512>}, {transform_indices = @transform_7, window_bounds = array<i64: 1, 2, 512>}]} {
    %c0_i32 = arith.constant 0 : i32
    %0 = arith.cmpi eq, %arg2, %c0_i32 : i32
    %1 = arith.extui %0 : i1 to i32
    %c0_i32_0 = arith.constant 0 : i32
    %2 = arith.cmpi ne, %1, %c0_i32_0 : i32
    scf.if %2 {
      %cst_37 = arith.constant 0xFF800000 : f32
      %46 = vector.broadcast %cst_37 : f32 to vector<1x2x512xf32>
      %c0_38 = arith.constant 0 : index
      %c0_39 = arith.constant 0 : index
      %c0_40 = arith.constant 0 : index
      %47 = vector.load %arg10[%c0_38, %c0_39, %c0_40] : memref<1x2x512xf32, #tpu.memory_space<vmem>>, vector<1x2x512xf32>
      tpu.vector_store %arg10[%c0_38, %c0_39, %c0_40], %46 {strides = array<i32>} : memref<1x2x512xf32, #tpu.memory_space<vmem>>, vector<1x2x512xf32>,
    } else {
    }
    %c0 = arith.constant 0 : index
    %c0_1 = arith.constant 0 : index
    %c0_2 = arith.constant 0 : index
    %3 = vector.load %arg3[%c0, %c0_1, %c0_2] : memref<2x8x8xf32, #tpu.memory_space<vmem>>, vector<2x8x8xf32>
    %4 = vector.shape_cast %3 : vector<2x8x8xf32> to vector<16x8xf32>
    %c0_3 = arith.constant 0 : index
    %c0_4 = arith.constant 0 : index
    %5 = vector.load %arg4[%c0_3, %c0_4] : memref<8x64xf32, #tpu.memory_space<vmem>>, vector<8x64xf32>
    %cst = arith.constant dense<0.000000e+00> : vector<16x64xf32>
    %6 = tpu.matmul %4, %5, %cst {dimension_numbers = #tpu.dot_dimension_numbers<[1], [0], [0], [1], [0, 0, 1, 1], [], []>} : vector<16x8xf32>, vector<8x64xf32>, vector<16x64xf32> -> vector<16x64xf32>
    %c0_5 = arith.constant 0 : index
    %c0_6 = arith.constant 0 : index
    %7 = vector.load %arg5[%c0_5, %c0_6] : memref<1x64xf32, #tpu.memory_space<vmem>>, vector<1x64xf32>
    %8 = vector.broadcast %7 : vector<1x64xf32> to vector<16x64xf32>
    %9 = arith.addf %6, %8 : vector<16x64xf32>
    %cst_7 = arith.constant 0.000000e+00 : f32
    %10 = vector.broadcast %cst_7 : f32 to vector<16x64xf32>
    %11 = arith.cmpf ogt, %9, %10 : vector<16x64xf32>
    %cst_8 = arith.constant 0.00999999977 : f32
    %12 = vector.broadcast %cst_8 : f32 to vector<16x64xf32>
    %13 = arith.mulf %12, %9 : vector<16x64xf32>
    %14 = arith.select %11, %9, %13 : vector<16x64xi1>, vector<16x64xf32>
    %15 = arith.truncf %14 : vector<16x64xf32> to vector<16x64xbf16>
    %c0_9 = arith.constant 0 : index
    %c0_10 = arith.constant 0 : index
    %16 = vector.load %arg6[%c0_9, %c0_10] : memref<64x128xbf16, #tpu.memory_space<vmem>>, vector<64x128xbf16>
    %cst_11 = arith.constant dense<0.000000e+00> : vector<16x128xf32>
    %17 = tpu.matmul %15, %16, %cst_11 {dimension_numbers = #tpu.dot_dimension_numbers<[1], [0], [0], [1], [0, 0, 1, 1], [], []>} : vector<16x64xbf16>, vector<64x128xbf16>, vector<16x128xf32> -> vector<16x128xf32>
    %c0_12 = arith.constant 0 : index
    %c0_13 = arith.constant 0 : index
    %18 = vector.load %arg7[%c0_12, %c0_13] : memref<1x128xf32, #tpu.memory_space<vmem>>, vector<1x128xf32>
    %19 = vector.broadcast %18 : vector<1x128xf32> to vector<16x128xf32>
    %20 = arith.addf %17, %19 : vector<16x128xf32>
    %cst_14 = arith.constant 0.000000e+00 : f32
    %21 = vector.broadcast %cst_14 : f32 to vector<16x128xf32>
    %22 = arith.cmpf ogt, %20, %21 : vector<16x128xf32>
    %cst_15 = arith.constant 0.00999999977 : f32
    %23 = vector.broadcast %cst_15 : f32 to vector<16x128xf32>
    %24 = arith.mulf %23, %20 : vector<16x128xf32>
    %25 = arith.select %22, %20, %24 : vector<16x128xi1>, vector<16x128xf32>
    %26 = arith.truncf %25 : vector<16x128xf32> to vector<16x128xbf16>
    %c0_16 = arith.constant 0 : index
    %c0_17 = arith.constant 0 : index
    %27 = vector.load %arg8[%c0_16, %c0_17] : memref<128x512xbf16, #tpu.memory_space<vmem>>, vector<128x256xbf16>
    %cst_18 = arith.constant dense<0.000000e+00> : vector<16x256xf32>
    %28 = tpu.matmul %26, %27, %cst_18 {dimension_numbers = #tpu.dot_dimension_numbers<[1], [0], [0], [1], [0, 0, 1, 1], [], []>} : vector<16x128xbf16>, vector<128x256xbf16>, vector<16x256xf32> -> vector<16x256xf32>
    %29 = vector.shape_cast %28 : vector<16x256xf32> to vector<2x8x256xf32>
    %cst_19 = arith.constant dense<0xFF800000> : vector<2x256xf32>
    %30 = vector.multi_reduction <maximumf>, %29, %cst_19 [1] : vector<2x8x256xf32> to vector<2x256xf32>
    %c0_20 = arith.constant 0 : index
    %c0_21 = arith.constant 0 : index
    %c0_22 = arith.constant 0 : index
    %31 = vector.load %arg10[%c0_20, %c0_21, %c0_22] : memref<1x2x512xf32, #tpu.memory_space<vmem>>, vector<1x2x256xf32>
    %32 = vector.shape_cast %30 : vector<2x256xf32> to vector<1x2x256xf32>
    %33 = arith.maximumf %31, %32 : vector<1x2x256xf32>
    %c0_23 = arith.constant 0 : index
    %c0_24 = arith.constant 0 : index
    %c0_25 = arith.constant 0 : index
    %34 = vector.load %arg10[%c0_23, %c0_24, %c0_25] : memref<1x2x512xf32, #tpu.memory_space<vmem>>, vector<1x2x256xf32>
    tpu.vector_store %arg10[%c0_23, %c0_24, %c0_25], %33 {strides = array<i32>} : memref<1x2x512xf32, #tpu.memory_space<vmem>>, vector<1x2x256xf32>,
    %c0_26 = arith.constant 0 : index
    %c256 = arith.constant 256 : index
    %35 = vector.load %arg8[%c0_26, %c256] : memref<128x512xbf16, #tpu.memory_space<vmem>>, vector<128x256xbf16>
    %cst_27 = arith.constant dense<0.000000e+00> : vector<16x256xf32>
    %36 = tpu.matmul %26, %35, %cst_27 {dimension_numbers = #tpu.dot_dimension_numbers<[1], [0], [0], [1], [0, 0, 1, 1], [], []>} : vector<16x128xbf16>, vector<128x256xbf16>, vector<16x256xf32> -> vector<16x256xf32>
    %37 = vector.shape_cast %36 : vector<16x256xf32> to vector<2x8x256xf32>
    %cst_28 = arith.constant dense<0xFF800000> : vector<2x256xf32>
    %38 = vector.multi_reduction <maximumf>, %37, %cst_28 [1] : vector<2x8x256xf32> to vector<2x256xf32>
    %c0_29 = arith.constant 0 : index
    %c0_30 = arith.constant 0 : index
    %c256_31 = arith.constant 256 : index
    %39 = vector.load %arg10[%c0_29, %c0_30, %c256_31] : memref<1x2x512xf32, #tpu.memory_space<vmem>>, vector<1x2x256xf32>
    %40 = vector.shape_cast %38 : vector<2x256xf32> to vector<1x2x256xf32>
    %41 = arith.maximumf %39, %40 : vector<1x2x256xf32>
    %c0_32 = arith.constant 0 : index
    %c0_33 = arith.constant 0 : index
    %c256_34 = arith.constant 256 : index
    %42 = vector.load %arg10[%c0_32, %c0_33, %c256_34] : memref<1x2x512xf32, #tpu.memory_space<vmem>>, vector<1x2x256xf32>
    tpu.vector_store %arg10[%c0_32, %c0_33, %c256_34], %41 {strides = array<i32>} : memref<1x2x512xf32, #tpu.memory_space<vmem>>, vector<1x2x256xf32>,
    %c0_i32_35 = arith.constant 0 : i32
    %43 = arith.cmpi eq, %arg2, %c0_i32_35 : i32
    %44 = arith.extui %43 : i1 to i32
    %c0_i32_36 = arith.constant 0 : i32
    %45 = arith.cmpi ne, %44, %c0_i32_36 : i32
    scf.if %45 {
      %c0_37 = arith.constant 0 : index
      %c0_38 = arith.constant 0 : index
      %c0_39 = arith.constant 0 : index
      %46 = vector.load %arg10[%c0_37, %c0_38, %c0_39] : memref<1x2x512xf32, #tpu.memory_space<vmem>>, vector<1x2x512xf32>
      %c0_40 = arith.constant 0 : index
      %c0_41 = arith.constant 0 : index
      %47 = vector.load %arg9[%c0_40, %c0_41] : memref<1x512xf32, #tpu.memory_space<vmem>>, vector<1x512xf32>
      %48 = vector.shape_cast %47 : vector<1x512xf32> to vector<1x1x512xf32>
      %49 = vector.broadcast %48 : vector<1x1x512xf32> to vector<1x2x512xf32>
      %50 = arith.addf %46, %49 : vector<1x2x512xf32>
      %cst_42 = arith.constant 0.000000e+00 : f32
      %51 = vector.broadcast %cst_42 : f32 to vector<1x2x512xf32>
      %52 = arith.cmpf ogt, %50, %51 : vector<1x2x512xf32>
      %cst_43 = arith.constant 0.00999999977 : f32
      %53 = vector.broadcast %cst_43 : f32 to vector<1x2x512xf32>
      %54 = arith.mulf %53, %50 : vector<1x2x512xf32>
      %55 = arith.select %52, %50, %54 : vector<1x2x512xi1>, vector<1x2x512xf32>
      %c0_44 = arith.constant 0 : index
      %c0_45 = arith.constant 0 : index
      %c0_46 = arith.constant 0 : index
      %56 = vector.load %arg10[%c0_44, %c0_45, %c0_46] : memref<1x2x512xf32, #tpu.memory_space<vmem>>, vector<1x2x512xf32>
      tpu.vector_store %arg10[%c0_44, %c0_45, %c0_46], %55 {strides = array<i32>} : memref<1x2x512xf32, #tpu.memory_space<vmem>>, vector<1x2x512xf32>,
    } else {
    }
    return
  }
  func.func @transform_0(%arg0: i32, %arg1: i32, %arg2: i32) -> (i32, i32, i32) {
    %c0_i32 = arith.constant 0 : i32
    %c0_i32_0 = arith.constant 0 : i32
    return %arg0, %arg2, %c0_i32 : i32, i32, i32
  }
  func.func @transform_1(%arg0: i32, %arg1: i32, %arg2: i32) -> (i32, i32) {
    %c0_i32 = arith.constant 0 : i32
    %c0_i32_0 = arith.constant 0 : i32
    %c0_i32_1 = arith.constant 0 : i32
    return %c0_i32, %c0_i32_0 : i32, i32
  }
  func.func @transform_2(%arg0: i32, %arg1: i32, %arg2: i32) -> (i32, i32) {
    %c0_i32 = arith.constant 0 : i32
    %c0_i32_0 = arith.constant 0 : i32
    %c0_i32_1 = arith.constant 0 : i32
    return %c0_i32, %c0_i32_0 : i32, i32
  }
  func.func @transform_3(%arg0: i32, %arg1: i32, %arg2: i32) -> (i32, i32) {
    %c0_i32 = arith.constant 0 : i32
    %c0_i32_0 = arith.constant 0 : i32
    %c0_i32_1 = arith.constant 0 : i32
    return %c0_i32, %c0_i32_0 : i32, i32
  }
  func.func @transform_4(%arg0: i32, %arg1: i32, %arg2: i32) -> (i32, i32) {
    %c0_i32 = arith.constant 0 : i32
    %c0_i32_0 = arith.constant 0 : i32
    %c0_i32_1 = arith.constant 0 : i32
    return %c0_i32, %c0_i32_0 : i32, i32
  }
  func.func @transform_5(%arg0: i32, %arg1: i32, %arg2: i32) -> (i32, i32) {
    %c0_i32 = arith.constant 0 : i32
    %c0_i32_0 = arith.constant 0 : i32
    return %c0_i32, %arg1 : i32, i32
  }
  func.func @transform_6(%arg0: i32, %arg1: i32, %arg2: i32) -> (i32, i32) {
    %c0_i32 = arith.constant 0 : i32
    %c0_i32_0 = arith.constant 0 : i32
    return %c0_i32, %arg1 : i32, i32
  }
  func.func @transform_7(%arg0: i32, %arg1: i32, %arg2: i32) -> (i32, i32, i32) {
    %c0_i32 = arith.constant 0 : i32
    %c0_i32_0 = arith.constant 0 : i32
    return %arg0, %c0_i32, %arg1 : i32, i32, i32
  }
}

</mosaic_0001>

<llo_original>
// kernel: tpu_custom_call.1
$region0: #{tpu_custom_call.1}
  #allocation0 [shape = 'u32[]', space=smem, size = 0x4, offset = 0x4, fixed_abs, tag = 'smem constant byte address 0x4 - core index']
  #allocation1 [shape = 'u32[144,128]{1,0:T(1,128)}', space=vmem, size = 0x12000, scoped, tag = 'internal scratch']
  %s0 = inlined_call_operand.hbm [shape: f32[2,8,8], index: 0, kind: input, shape index: {}]
  %s1 = inlined_call_operand.hbm [shape: f32[8,64], index: 1, kind: input, shape index: {}]
  %s2 = inlined_call_operand.vmem [shape: f32[1,64], index: 2, kind: input, shape index: {}]
  %s3 = inlined_call_operand.hbm [shape: bf16[64,128], index: 3, kind: input, shape index: {}]
  %s4 = inlined_call_operand.vmem [shape: f32[1,128], index: 4, kind: input, shape index: {}]
  %s5 = inlined_call_operand.hbm [shape: bf16[128,1024], index: 5, kind: input, shape index: {}]
  %s6 = inlined_call_operand.vmem [shape: f32[1,1024], index: 6, kind: input, shape index: {}]
  %s7 = inlined_call_operand.hbm [shape: f32[1,2,1024], index: 7, kind: output, shape index: {}]
  %s8 = sld [smem:[#allocation0]]
  $region85: #{tpu_custom_call.1} parent=0
    _
  %s10 = ssub.s32 1, %s8
  %s11 = scalar_select 0, %s10, %s8
  $region1: #{tpu_custom_call.1} parent=0
    #allocation2 [shape = 'u8[8192]{0}', space=vmem, size = 0x2000, scoped, tag = 'input window, operand 0, single buffered']
    #allocation3 [shape = 's32[2]{0}', space=sflag, size = 0x8, scoped, tag = 'scoped memory for tpu_custom_call.1']
    #allocation4 [shape = 's32[2]{0}', space=sflag, size = 0x8, scoped, tag = 'scoped memory for tpu_custom_call.1']
    #allocation5 [shape = 'u8[4096]{0}', space=vmem, size = 0x1000, scoped, tag = 'input window, operand 1, single buffered']
    #allocation6 [shape = 's32[1]{0}', space=sflag, size = 0x4, scoped, tag = 'scoped memory for tpu_custom_call.1']
    #allocation7 [shape = 'u8[16384]{0}', space=vmem, size = 0x4000, scoped, tag = 'input window, operand 3, single buffered']
    #allocation8 [shape = 'u8[262144]{0}', space=vmem, size = 0x40000, scoped, tag = 'input window, operand 5']
    #allocation9 [shape = 's32[2]{0}', space=sflag, size = 0x8, scoped, tag = 'scoped memory for tpu_custom_call.1']
    #allocation10 [shape = 'u8[8192]{0}', space=vmem, size = 0x2000, scoped, tag = 'output window, operand 0']
    %12 = vsyncpa [#allocation3], 0
    %13 = vsyncpa [#allocation6], 0
    %14 = vsyncpa [#allocation9], 0
    %s15 = scalar_lea.sflag [#allocation9], 1
    %16 = vsyncpa %s15, 0
    %17 = vsyncpa [#allocation4], 0
    %s18 = scalar_lea.sflag [#allocation4], 1
    %19 = vsyncpa %s18, 0
    loop: start=0, step=1, limit=4
    $region2: #{tpu_custom_call.1} parent=1 // loop_pre_header
      _
    $region3: #{tpu_custom_call.1} parent=1 // loop_header
      %s21 = sphi 0, %s25
      %p22 = scmp.ge.s32.totalorder %s21, 4
      %s28 = sphi 0, %s47
      %s29 = sphi 0, %s43
      %s30 = sphi 0, %s39
      %s31 = sphi 0, %s28
      %s32 = sphi 0, %s29
      %s33 = sphi 0, %s30
      %s34 = sphi 0, %s31
      %s35 = sphi 0, %s32
      %s36 = sphi 0, %s33
      %s52 = sphi 0, %s54
      %s55 = sphi 0, %s52
      %s56 = sphi 0, %s55
      %s72 = sphi 0, %s56
      %s76 = sphi 0, %s76
      %s78 = sphi 0, %s76
      %s79 = sphi 0, %s78
      %s93 = sphi 0, %s79
      %s97 = sphi 0, %s97
      %s99 = sphi 0, %s97
      %s100 = sphi 0, %s99
      %s114 = sphi 0, %s100
      %s118 = sphi 0, %s118
      %s120 = sphi 0, %s118
      %s121 = sphi 0, %s120
      %s135 = sphi 0, %s121
      %s139 = sphi 0, %s139
      %s141 = sphi 0, %s139
      %s142 = sphi 0, %s141
      %s156 = sphi 0, %s142
      %s162 = sphi 0, %s164
      %s165 = sphi 0, %s162
      %s166 = sphi 0, %s165
      %s182 = sphi 0, %s166
      %s188 = sphi 0, %s190
      %s191 = sphi 0, %s188
      %s192 = sphi 0, %s191
      %s208 = sphi 0, %s192
      %s216 = sphi 0, %s218
      %s219 = sphi 0, %s216
      %s220 = sphi 0, %s219
      %s236 = sphi 0, %s220
    $region4: #{tpu_custom_call.1} parent=1 // loop_header_branch
      %24 = sbr.rel (%p22) target = $region8
    $region5: #{tpu_custom_call.1} parent=1 // loop_body
      %s26 = ssub.s32 %s21, 1
      %s27 = ssub.s32 %s21, 2
      %s37 = sadd.s32 1, %s30
      %p38 = scmp.ge.s32.totalorder %s37, 1
      %s39 = scalar_select %p38, 0, %s37
      %s40 = sadd.s32 1, %s29
      %s41 = scalar_select %p38, %s40, %s29
      %p42 = scmp.ge.s32.totalorder %s41, 2
      %s43 = scalar_select %p42, 0, %s41
      %s44 = sadd.s32 1, %s28
      %s45 = scalar_select %p42, %s44, %s28
      %p46 = scmp.ge.s32.totalorder %s45, 1
      %s47 = scalar_select %p46, 0, %s45
      %s48 = ssub.s32 %s28, %s47
      %s49 = ssub.s32 %s30, %s39
      %s50 = sor.u32 %s48, %s49
      %p51 = scmp.eq.s32.totalorder %s50, 0
      %s53 = sadd.s32 %s52, 1
      %s54 = scalar_select %p51, %s52, %s53
      %p57 = pneg %p51
      %p58 = scmp.eq.s32.totalorder %s21, 1
      %p59 = por %p57, %p58
      %p60 = scmp.ne.s32.totalorder %s52, %s55
      %p61 = scmp.eq.s32.totalorder %s21, 0
      %p62 = por %p60, %p61
      %p63 = scmp.ne.s32.totalorder %s52, %s55
      %p64 = scmp.eq.s32.totalorder %s26, 1
      %p65 = por %p63, %p64
      %p66 = scmp.ne.s32.totalorder %s55, %s56
      %p67 = scmp.eq.s32.totalorder %s26, 0
      %p68 = por %p66, %p67
      %p69 = scmp.ne.s32.totalorder %s55, %s56
      %p70 = scmp.eq.s32.totalorder %s27, 1
      %p71 = por %p69, %p70
      %p73 = scmp.ne.s32.totalorder %s56, %s72
      %p74 = scmp.eq.s32.totalorder %s27, 0
      %p75 = por %p73, %p74
      %s77 = sadd.s32 %s76, 1
      %p80 = scmp.eq.s32.totalorder %s21, 1
      %p81 = scmp.ne.s32.totalorder %s76, %s78
      %p82 = scmp.eq.s32.totalorder %s21, 0
      %p83 = por %p81, %p82
      %p84 = scmp.ne.s32.totalorder %s76, %s78
      %p85 = scmp.eq.s32.totalorder %s26, 1
      %p86 = por %p84, %p85
      %p87 = scmp.ne.s32.totalorder %s78, %s79
      %p88 = scmp.eq.s32.totalorder %s26, 0
      %p89 = por %p87, %p88
      %p90 = scmp.ne.s32.totalorder %s78, %s79
      %p91 = scmp.eq.s32.totalorder %s27, 1
      %p92 = por %p90, %p91
      %p94 = scmp.ne.s32.totalorder %s79, %s93
      %p95 = scmp.eq.s32.totalorder %s27, 0
      %p96 = por %p94, %p95
      %s98 = sadd.s32 %s97, 1
      %p101 = scmp.eq.s32.totalorder %s21, 1
      %p102 = scmp.ne.s32.totalorder %s97, %s99
      %p103 = scmp.eq.s32.totalorder %s21, 0
      %p104 = por %p102, %p103
      %p105 = scmp.ne.s32.totalorder %s97, %s99
      %p106 = scmp.eq.s32.totalorder %s26, 1
      %p107 = por %p105, %p106
      %p108 = scmp.ne.s32.totalorder %s99, %s100
      %p109 = scmp.eq.s32.totalorder %s26, 0
      %p110 = por %p108, %p109
      %p111 = scmp.ne.s32.totalorder %s99, %s100
      %p112 = scmp.eq.s32.totalorder %s27, 1
      %p113 = por %p111, %p112
      %p115 = scmp.ne.s32.totalorder %s100, %s114
      %p116 = scmp.eq.s32.totalorder %s27, 0
      %p117 = por %p115, %p116
      %s119 = sadd.s32 %s118, 1
      %p122 = scmp.eq.s32.totalorder %s21, 1
      %p123 = scmp.ne.s32.totalorder %s118, %s120
      %p124 = scmp.eq.s32.totalorder %s21, 0
      %p125 = por %p123, %p124
      %p126 = scmp.ne.s32.totalorder %s118, %s120
      %p127 = scmp.eq.s32.totalorder %s26, 1
      %p128 = por %p126, %p127
      %p129 = scmp.ne.s32.totalorder %s120, %s121
      %p130 = scmp.eq.s32.totalorder %s26, 0
      %p131 = por %p129, %p130
      %p132 = scmp.ne.s32.totalorder %s120, %s121
      %p133 = scmp.eq.s32.totalorder %s27, 1
      %p134 = por %p132, %p133
      %p136 = scmp.ne.s32.totalorder %s121, %s135
      %p137 = scmp.eq.s32.totalorder %s27, 0
      %p138 = por %p136, %p137
      %s140 = sadd.s32 %s139, 1
      %p143 = scmp.eq.s32.totalorder %s21, 1
      %p144 = scmp.ne.s32.totalorder %s139, %s141
      %p145 = scmp.eq.s32.totalorder %s21, 0
      %p146 = por %p144, %p145
      %p147 = scmp.ne.s32.totalorder %s139, %s141
      %p148 = scmp.eq.s32.totalorder %s26, 1
      %p149 = por %p147, %p148
      %p150 = scmp.ne.s32.totalorder %s141, %s142
      %p151 = scmp.eq.s32.totalorder %s26, 0
      %p152 = por %p150, %p151
      %p153 = scmp.ne.s32.totalorder %s141, %s142
      %p154 = scmp.eq.s32.totalorder %s27, 1
      %p155 = por %p153, %p154
      %p157 = scmp.ne.s32.totalorder %s142, %s156
      %p158 = scmp.eq.s32.totalorder %s27, 0
      %p159 = por %p157, %p158
      %s160 = ssub.s32 %s29, %s43
      %p161 = scmp.eq.s32.totalorder %s160, 0
      %s163 = sadd.s32 %s162, 1
      %s164 = scalar_select %p161, %s162, %s163
      %p167 = pneg %p161
      %p168 = scmp.eq.s32.totalorder %s21, 1
      %p169 = por %p167, %p168
      %p170 = scmp.ne.s32.totalorder %s162, %s165
      %p171 = scmp.eq.s32.totalorder %s21, 0
      %p172 = por %p170, %p171
      %p173 = scmp.ne.s32.totalorder %s162, %s165
      %p174 = scmp.eq.s32.totalorder %s26, 1
      %p175 = por %p173, %p174
      %p176 = scmp.ne.s32.totalorder %s165, %s166
      %p177 = scmp.eq.s32.totalorder %s26, 0
      %p178 = por %p176, %p177
      %p179 = scmp.ne.s32.totalorder %s165, %s166
      %p180 = scmp.eq.s32.totalorder %s27, 1
      %p181 = por %p179, %p180
      %p183 = scmp.ne.s32.totalorder %s166, %s182
      %p184 = scmp.eq.s32.totalorder %s27, 0
      %p185 = por %p183, %p184
      %s186 = ssub.s32 %s29, %s43
      %p187 = scmp.eq.s32.totalorder %s186, 0
      %s189 = sadd.s32 %s188, 1
      %s190 = scalar_select %p187, %s188, %s189
      %p193 = pneg %p187
      %p194 = scmp.eq.s32.totalorder %s21, 1
      %p195 = por %p193, %p194
      %p196 = scmp.ne.s32.totalorder %s188, %s191
      %p197 = scmp.eq.s32.totalorder %s21, 0
      %p198 = por %p196, %p197
      %p199 = scmp.ne.s32.totalorder %s188, %s191
      %p200 = scmp.eq.s32.totalorder %s26, 1
      %p201 = por %p199, %p200
      %p202 = scmp.ne.s32.totalorder %s191, %s192
      %p203 = scmp.eq.s32.totalorder %s26, 0
      %p204 = por %p202, %p203
      %p205 = scmp.ne.s32.totalorder %s191, %s192
      %p206 = scmp.eq.s32.totalorder %s27, 1
      %p207 = por %p205, %p206
      %p209 = scmp.ne.s32.totalorder %s192, %s208
      %p210 = scmp.eq.s32.totalorder %s27, 0
      %p211 = por %p209, %p210
      %s212 = ssub.s32 %s28, %s47
      %s213 = ssub.s32 %s29, %s43
      %s214 = sor.u32 %s212, %s213
      %p215 = scmp.eq.s32.totalorder %s214, 0
      %s217 = sadd.s32 %s216, 1
      %s218 = scalar_select %p215, %s216, %s217
      %p221 = pneg %p215
      %p222 = scmp.eq.s32.totalorder %s21, 1
      %p223 = por %p221, %p222
      %p224 = scmp.ne.s32.totalorder %s216, %s219
      %p225 = scmp.eq.s32.totalorder %s21, 0
      %p226 = por %p224, %p225
      %p227 = scmp.ne.s32.totalorder %s216, %s219
      %p228 = scmp.eq.s32.totalorder %s26, 1
      %p229 = por %p227, %p228
      %p230 = scmp.ne.s32.totalorder %s219, %s220
      %p231 = scmp.eq.s32.totalorder %s26, 0
      %p232 = por %p230, %p231
      %p233 = scmp.ne.s32.totalorder %s219, %s220
      %p234 = scmp.eq.s32.totalorder %s27, 1
      %p235 = por %p233, %p234
      %p237 = scmp.ne.s32.totalorder %s220, %s236
      %p238 = scmp.eq.s32.totalorder %s27, 0
      %p239 = por %p237, %p238
      %p240 = scmp.le.s32.totalorder 1, %s21
      %p241 = scmp.lt.s32.totalorder %s21, 3
      %p242 = pnand %p240, %p241
      %p243 = pneg %p242
      // Predicated region
      $region9: #{tpu_custom_call.1} parent=5 // pred_check
        _
      $region10: #{tpu_custom_call.1} parent=5 // pred_check_branch
        %245 = sbr.rel (%p242) target = $region12
      $region11: #{tpu_custom_call.1} parent=5 // pred_region
        %s246 = ssub.s32 %s21, 1
        // Predicated region
        $region13: #{tpu_custom_call.1} parent=11 // pred_check
          %p247 = pneg %p68
        $region14: #{tpu_custom_call.1} parent=11 // pred_check_branch
          %249 = sbr.rel (%p247) target = $region16
        $region15: #{tpu_custom_call.1} parent=11 // pred_region
          %s250 = smul.u32 2, %s31
          %s252 = ssub.s32 256, 256
          %253 = vsyncadd [#allocation3], %s252
          %s254 = sadd.s32 %s33, %s250
          %s255 = smul.addr %s254, 128
          %s256 = scalar_lea.hbm %s0, %s255
          %s257 = sshll.u32 [#allocation2], 4
          %s258 = int_to_ptr.vmem [resolvable:$true] %s257
          %263 = dma.hbm_to_vmem [thread:$0]  %s256, 256, %s258, [#allocation3], 128, 128, 8
        $region16: #{tpu_custom_call.1} parent=11 // pred_fallthru
          _
        // Predicated region
        $region17: #{tpu_custom_call.1} parent=11 // pred_check
          %p264 = pneg %p89
        $region18: #{tpu_custom_call.1} parent=11 // pred_check_branch
          %266 = sbr.rel (%p264) target = $region20
        $region19: #{tpu_custom_call.1} parent=11 // pred_region
          %s268 = ssub.s32 128, 128
          %269 = vsyncadd [#allocation6], %s268
          %s271 = sshll.u32 [#allocation5], 4
          %s272 = int_to_ptr.vmem [resolvable:$true] %s271
          %274 = dma.hbm_to_vmem [thread:$0]  %s1, 128, %s272, [#allocation6]
        $region20: #{tpu_custom_call.1} parent=11 // pred_fallthru
          _
        // Predicated region
        $region21: #{tpu_custom_call.1} parent=11 // pred_check
          %p275 = pneg %p110
        $region22: #{tpu_custom_call.1} parent=11 // pred_check_branch
          %277 = sbr.rel (%p275) target = $region24
        $region23: #{tpu_custom_call.1} parent=11 // pred_region
          _
        $region24: #{tpu_custom_call.1} parent=11 // pred_fallthru
          _
        // Predicated region
        $region25: #{tpu_custom_call.1} parent=11 // pred_check
          %p278 = pneg %p131
        $region26: #{tpu_custom_call.1} parent=11 // pred_check_branch
          %280 = sbr.rel (%p278) target = $region28
        $region27: #{tpu_custom_call.1} parent=11 // pred_region
          %s282 = ssub.s32 512, 512
          %283 = vsyncadd [#allocation6], %s282
          %s284 = sshll.u32 [#allocation7], 4
          %s285 = int_to_ptr.vmem [resolvable:$true] %s284
          %290 = dma.hbm_to_vmem [thread:$0]  %s3, 512, %s285, [#allocation6], 64, 64, 4
        $region28: #{tpu_custom_call.1} parent=11 // pred_fallthru
          _
        // Predicated region
        $region29: #{tpu_custom_call.1} parent=11 // pred_check
          %p291 = pneg %p152
        $region30: #{tpu_custom_call.1} parent=11 // pred_check_branch
          %293 = sbr.rel (%p291) target = $region32
        $region31: #{tpu_custom_call.1} parent=11 // pred_region
          _
        $region32: #{tpu_custom_call.1} parent=11 // pred_fallthru
          _
      $region12: #{tpu_custom_call.1} parent=5 // pred_fallthru
        _
      %p294 = scmp.lt.s32.totalorder %s21, 2
      // Predicated region
      $region33: #{tpu_custom_call.1} parent=5 // pred_check
        %p295 = pneg %p294
      $region34: #{tpu_custom_call.1} parent=5 // pred_check_branch
        %297 = sbr.rel (%p295) target = $region36
      $region35: #{tpu_custom_call.1} parent=5 // pred_region
        // Predicated region
        $region37: #{tpu_custom_call.1} parent=35 // pred_check
          %p298 = pneg %p172
        $region38: #{tpu_custom_call.1} parent=35 // pred_check_branch
          %300 = sbr.rel (%p298) target = $region40
        $region39: #{tpu_custom_call.1} parent=35 // pred_region
          %s301 = sand.u32 %s162, 1
          %s302 = scalar_lea.sflag [#allocation9], %s301
          %s303 = sand.u32 %s162, 1
          %s304 = smul.addr %s303, 256
          %s305 = scalar_lea.vmem [#allocation8], %s304
          %s306 = smul.u32 4, %s29
          %s308 = ssub.s32 4096, 4096
          %309 = vsyncadd %s302, %s308
          %s310 = smul.addr %s306, 64
          %s311 = scalar_lea.hbm %s5, %s310
          %s312 = sshll.u32 %s305, 4
          %s313 = int_to_ptr.vmem [resolvable:$true] %s312
          %318 = dma.hbm_to_vmem [thread:$0]  %s311, 4096, %s313, %s302, 512, 256, 16
        $region40: #{tpu_custom_call.1} parent=35 // pred_fallthru
          _
        // Predicated region
        $region41: #{tpu_custom_call.1} parent=35 // pred_check
          %p319 = pneg %p198
        $region42: #{tpu_custom_call.1} parent=35 // pred_check_branch
          %321 = sbr.rel (%p319) target = $region44
        $region43: #{tpu_custom_call.1} parent=35 // pred_region
          %s322 = smul.u32 4, %s29
          %p323 = scmp.lt.s32.totalorder %s322, 7
          %s324 = scalar_select %p323, %s322, 7
          %s325 = scalar_lea.vmem %s6, %s324
          %s326 = smul.u32 4, %s29
        $region44: #{tpu_custom_call.1} parent=35 // pred_fallthru
          _
      $region36: #{tpu_custom_call.1} parent=5 // pred_fallthru
        _
      %p327 = scmp.le.s32.totalorder 1, %s21
      %p328 = scmp.lt.s32.totalorder %s21, 3
      %p329 = pnand %p327, %p328
      %p330 = pneg %p329
      // Predicated region
      $region45: #{tpu_custom_call.1} parent=5 // pred_check
        _
      $region46: #{tpu_custom_call.1} parent=5 // pred_check_branch
        %332 = sbr.rel (%p329) target = $region48
      $region47: #{tpu_custom_call.1} parent=5 // pred_region
        %s333 = ssub.s32 %s21, 1
        // Predicated region
        $region49: #{tpu_custom_call.1} parent=47 // pred_check
          %p334 = pneg %p68
        $region50: #{tpu_custom_call.1} parent=47 // pred_check_branch
          %336 = sbr.rel (%p334) target = $region52
        $region51: #{tpu_custom_call.1} parent=47 // pred_region
          %337 = dma.done [#allocation3], 256
        $region52: #{tpu_custom_call.1} parent=47 // pred_fallthru
          _
        // Predicated region
        $region53: #{tpu_custom_call.1} parent=47 // pred_check
          %p338 = pneg %p89
        $region54: #{tpu_custom_call.1} parent=47 // pred_check_branch
          %340 = sbr.rel (%p338) target = $region56
        $region55: #{tpu_custom_call.1} parent=47 // pred_region
          %341 = dma.done [#allocation6], 128
        $region56: #{tpu_custom_call.1} parent=47 // pred_fallthru
          _
        // Predicated region
        $region57: #{tpu_custom_call.1} parent=47 // pred_check
          %p342 = pneg %p131
        $region58: #{tpu_custom_call.1} parent=47 // pred_check_branch
          %344 = sbr.rel (%p342) target = $region60
        $region59: #{tpu_custom_call.1} parent=47 // pred_region
          %345 = dma.done [#allocation6], 512
        $region60: #{tpu_custom_call.1} parent=47 // pred_fallthru
          _
        %s346 = sand.u32 %s165, 1
        %s347 = scalar_lea.sflag [#allocation9], %s346
        %s348 = sand.u32 %s165, 1
        %s349 = smul.addr %s348, 256
        %s350 = scalar_lea.vmem [#allocation8], %s349
        // Predicated region
        $region61: #{tpu_custom_call.1} parent=47 // pred_check
          %p351 = pneg %p178
        $region62: #{tpu_custom_call.1} parent=47 // pred_check_branch
          %353 = sbr.rel (%p351) target = $region64
        $region63: #{tpu_custom_call.1} parent=47 // pred_region
          %354 = dma.done %s347, 4096
        $region64: #{tpu_custom_call.1} parent=47 // pred_fallthru
          _
        %p355 = pneg %p68
        %p356 = pneg %p65
        %p357 = pneg %p89
        %p358 = pneg %p86
        %p359 = pneg %p110
        %p360 = pneg %p107
        %p361 = pneg %p131
        %p362 = pneg %p128
        %p363 = pneg %p152
        %p364 = pneg %p149
        %s365 = sand.u32 %s165, 1
        %s366 = scalar_lea.sflag [#allocation9], %s365
        %s367 = sand.u32 %s165, 1
        %s368 = smul.addr %s367, 256
        %s369 = scalar_lea.vmem [#allocation8], %s368
        %p370 = pneg %p178
        %p371 = pneg %p175
        %s372 = smul.u32 4, %s32
        %p373 = scmp.lt.s32.totalorder %s372, 7
        %s374 = scalar_select %p373, %s372, 7
        %s375 = scalar_lea.vmem %s6, %s374
        %p376 = pneg %p204
        %p377 = pneg %p201
        %p378 = pneg %p232
        %p379 = pneg %p229
        %s380 = sand.u32 %s219, 1
        %s381 = scalar_lea.sflag [#allocation4], %s380
        %s382 = sand.u32 %s219, 1
        %s383 = smul.addr %s382, 8
        %s384 = scalar_lea.vmem [#allocation10], %s383
        %s385 = smul.u32 2, %s31
        %s386 = smul.u32 4, %s32
        %s387 = smul.u32 4, %s32
        %p388 = scmp.lt.s32.totalorder %s387, 7
        %s389 = scalar_select %p388, %s387, 7
        %s390 = scalar_lea.vmem %s6, %s389
        %s391 = smul.u32 4, %s32
        %s392 = smul.u32 4, %s32
        %p394 = scmp.eq.s32.totalorder %s33, 0
        // Predicated region
        $region65: #{tpu_custom_call.1} parent=47 // pred_check
          %p395 = pneg %p394
        $region66: #{tpu_custom_call.1} parent=47 // pred_check_branch
          %397 = sbr.rel (%p395) target = $region68
        $region67: #{tpu_custom_call.1} parent=47 // pred_region
          %398 = vst [vmem:[%s384] sm:$0xff] -inf
        $region68: #{tpu_custom_call.1} parent=47 // pred_fallthru
          _
        %v399 = vld [vmem:[#allocation2] sm:$0xff]
        %v400 = vld [vmem:[#allocation2 + $0x8] sm:$0xff]
        %v401 = vld [vmem:[#allocation5] sm:$0xff]
        %v402 = vld [vmem:[%s2] sm:$0x1]
        %v404 = vlaneseq
        %v405 = vshrl.u32 %v404, 7
        %v406 = vsub.s32 0, %v405
        %v407 = vrot.slane %v402, %v406
        %vm409 = vcmask 64512
        %v411 = vsel %vm409, %v399, 0
        %v414 = vsel %vm409, %v400, 0
        %416 = vmatprep.subr.mxu0 0.0
        %417 = vmatpush1.msra.mxu0 %v401
        %418 = vmatprep.subr.mxu0 0.0
        %419 = vmatpush1.msra.mxu0 0.0
        %420 = vmatprep.subr.mxu0 0.0
        %421 = vmatpush1.msra.mxu0 0.0
        %422 = vmatprep.subr.mxu0 0.0
        %423 = vmatpush1.msra.mxu0 0.0
        %424 = vmatprep.subr.mxu0 0.0
        %425 = vmatpush1.msra.mxu0 0.0
        %426 = vmatprep.subr.mxu0 0.0
        %427 = vmatpush1.msra.mxu0 0.0
        %428 = vmatprep.subr.mxu0 0.0
        %429 = vmatpush1.msra.mxu0 0.0
        %430 = vmatprep.subr.mxu0 0.0
        %431 = vmatpush1.msra.mxu0 0.0
        %432 = vmatprep.subr.mxu0 0.0
        %433 = vmatpush1.msra.mxu0 0.0
        %434 = vmatprep.subr.mxu0 0.0
        %435 = vmatpush1.msra.mxu0 0.0
        %436 = vmatprep.subr.mxu0 0.0
        %437 = vmatpush1.msra.mxu0 0.0
        %438 = vmatprep.subr.mxu0 0.0
        %439 = vmatpush1.msra.mxu0 0.0
        %440 = vmatprep.subr.mxu0 0.0
        %441 = vmatpush1.msra.mxu0 0.0
        %442 = vmatprep.subr.mxu0 0.0
        %443 = vmatpush1.msra.mxu0 0.0
        %444 = vmatprep.subr.mxu0 0.0
        %445 = vmatpush1.msra.mxu0 0.0
        %446 = vmatprep.subr.mxu0 0.0
        %447 = vmatpush1.msra.mxu0 0.0
        %448 = vmatprep.subr.mxu0 0.0
        %449 = vmatpush1.msra.mxu0 0.0
        %450 = vmatprep.subr.mxu0 0.0
        %451 = vmatpush1.msra.mxu0 0.0
        %452 = vmatprep.subr.mxu0 0.0
        %453 = vmatpush1.msra.mxu0 0.0
        %454 = vmatprep.subr.mxu0 0.0
        %455 = vmatpush1.msra.mxu0 0.0
        %456 = vmatprep.subr.mxu0 0.0
        %457 = vmatpush1.msra.mxu0 0.0
        %458 = vmatprep.subr.mxu0 0.0
        %459 = vmatpush1.msra.mxu0 0.0
        %460 = vmatprep.subr.mxu0 0.0
        %461 = vmatpush1.msra.mxu0 0.0
        %462 = vmatprep.subr.mxu0 0.0
        %463 = vmatpush1.msra.mxu0 0.0
        %464 = vmatprep.subr.mxu0 0.0
        %465 = vmatpush1.msra.mxu0 0.0
        %466 = vmatprep.subr.mxu0 0.0
        %467 = vmatpush1.msra.mxu0 0.0
        %468 = vmatprep.subr.mxu0 0.0
        %469 = vmatpush1.msra.mxu0 0.0
        %470 = vmatprep.subr.mxu0 0.0
        %471 = vmatpush1.msra.mxu0 0.0
        %472 = vmatprep.subr.mxu0 0.0
        %473 = vmatpush1.msra.mxu0 0.0
        %474 = vmatprep.subr.mxu0 0.0
        %475 = vmatpush1.msra.mxu0 0.0
        %476 = vmatprep.subr.mxu0 0.0
        %477 = vmatpush1.msra.mxu0 0.0
        %478 = vmatprep.subr.mxu0 0.0
        %479 = vmatpush1.msra.mxu0 0.0
        %480 = vmatprep.mubr.f32.mxu0 0.0
        %481 = vmatmul.mubr.f32.gmra.mrb[0].mxu0 %v411
        %v482 = vpop.f32.mrb[0].mxu0
        %v483 = vadd.f32 %v407, %v482
        %v484 = vpop.f32.mrb[0].mxu0
        %485 = vmatprep.mubr.f32.mxu0 0.0
        %486 = vmatmul.mubr.f32.gmra.mrb[0].mxu0 %v414
        %v487 = vpop.f32.mrb[0].mxu0
        %v488 = vadd.f32 %v407, %v487
        %v489 = vpop.f32.mrb[0].mxu0
        %490 = vdwg.mxu0
        %vm491 = vcmp.gt.f32.partialorder %v483, 0.0
        %vm492 = vcmp.gt.f32.partialorder %v488, 0.0
        %v493 = vmul.f32 %v483, 0.01
        %v494 = vmul.f32 %v488, 0.01
        %v495 = vsel %vm491, %v483, %v493
        %v496 = vsel %vm492, %v488, %v494
        %v497 = vpack.c.bf16 %v496, %v495
        %v498 = vld [vmem:[#allocation7] sm:$0xf]
        %v499 = vld [vmem:[#allocation7 + $0x4] sm:$0xf]
        %v500 = vld [vmem:[#allocation7 + $0x8] sm:$0xf]
        %v501 = vld [vmem:[#allocation7 + $0xc] sm:$0xf]
        %v502 = vld [vmem:[#allocation7 + $0x10] sm:$0xf]
        %v503 = vld [vmem:[#allocation7 + $0x14] sm:$0xf]
        %v504 = vld [vmem:[#allocation7 + $0x18] sm:$0xf]
        %v505 = vld [vmem:[#allocation7 + $0x1c] sm:$0xf]
        %v506 = vld [vmem:[%s4] sm:$0x1]
        %v508 = vlaneseq
        %v509 = vshrl.u32 %v508, 7
        %v510 = vsub.s32 0, %v509
        %v511 = vrot.slane %v506, %v510
        %v521 = vunpack.c.l.b16 %v498
        %v522 = vunpack.c.l.b16 %v499
        %v523 = vunpack.c.l.b16 %v500
        %v524 = vunpack.c.l.b16 %v501
        %v525 = vunpack.c.l.b16 %v502
        %v526 = vunpack.c.l.b16 %v503
        %v527 = vunpack.c.l.b16 %v504
        %v528 = vunpack.c.l.b16 %v505
        %v529 = vpack.c.b16 %v522, %v521
        %v530 = vpack.c.b16 %v524, %v523
        %v531 = vpack.c.b16 %v526, %v525
        %v532 = vpack.c.b16 %v528, %v527
        %vm537 = vcmask 523264
        %v539 = vsel %vm537, %v497, 0
        %541 = vmatprep.subr.bf16.mxu0 0
        %542 = vmatpush1.bf16.msra.mxu0 %v529
        %543 = vmatprep.subr.bf16.mxu0 0
        %544 = vmatpush1.bf16.msra.mxu0 %v530
        %545 = vmatprep.subr.bf16.mxu0 0
        %546 = vmatpush1.bf16.msra.mxu0 %v531
        %547 = vmatprep.subr.bf16.mxu0 0
        %548 = vmatpush1.bf16.msra.mxu0 %v532
        %549 = vmatprep.subr.bf16.mxu0 0
        %550 = vmatpush1.bf16.msra.mxu0 0
        %551 = vmatprep.subr.bf16.mxu0 0
        %552 = vmatpush1.bf16.msra.mxu0 0
        %553 = vmatprep.subr.bf16.mxu0 0
        %554 = vmatpush1.bf16.msra.mxu0 0
        %555 = vmatprep.subr.bf16.mxu0 0
        %556 = vmatpush1.bf16.msra.mxu0 0
        %557 = vmatprep.subr.bf16.mxu0 0
        %558 = vmatpush1.bf16.msra.mxu0 0
        %559 = vmatprep.subr.bf16.mxu0 0
        %560 = vmatpush1.bf16.msra.mxu0 0
        %561 = vmatprep.subr.bf16.mxu0 0
        %562 = vmatpush1.bf16.msra.mxu0 0
        %563 = vmatprep.subr.bf16.mxu0 0
        %564 = vmatpush1.bf16.msra.mxu0 0
        %565 = vmatprep.subr.bf16.mxu0 0
        %566 = vmatpush1.bf16.msra.mxu0 0
        %567 = vmatprep.subr.bf16.mxu0 0
        %568 = vmatpush1.bf16.msra.mxu0 0
        %569 = vmatprep.subr.bf16.mxu0 0
        %570 = vmatpush1.bf16.msra.mxu0 0
        %571 = vmatprep.subr.bf16.mxu0 0
        %572 = vmatpush1.bf16.msra.mxu0 0
        %573 = vmatprep.mubr.bf16.mxu0 0
        %574 = vmatmul.mubr.bf16.gmra.mrb[0].mxu0 %v539
        %v575 = vpop.f32.mrb[0].mxu0
        %v576 = vadd.f32 %v511, %v575
        %v577 = vpop.f32.mrb[0].mxu0
        %v578 = vpop.f32.mrb[0].mxu0
        %v579 = vadd.f32 %v511, %v578
        %v580 = vpop.f32.mrb[0].mxu0
        %581 = vdwg.mxu0
        %vm582 = vcmp.gt.f32.partialorder %v576, 0.0
        %vm583 = vcmp.gt.f32.partialorder %v579, 0.0
        %v584 = vmul.f32 %v576, 0.01
        %v585 = vmul.f32 %v579, 0.01
        %v586 = vsel %vm582, %v576, %v584
        %v587 = vsel %vm583, %v579, %v585
        %v588 = vpack.c.bf16 %v587, %v586
        %v589 = vld [vmem:[%s350] sm:$0xff]
        %v590 = vld [vmem:[%s350 + $0x10] sm:$0xff]
        %v591 = vld [vmem:[%s350 + $0x20] sm:$0xff]
        %v592 = vld [vmem:[%s350 + $0x30] sm:$0xff]
        %v593 = vld [vmem:[%s350 + $0x40] sm:$0xff]
        %v594 = vld [vmem:[%s350 + $0x50] sm:$0xff]
        %v595 = vld [vmem:[%s350 + $0x60] sm:$0xff]
        %v596 = vld [vmem:[%s350 + $0x70] sm:$0xff]
        %v597 = vld [vmem:[%s350 + $0x80] sm:$0xff]
        %v598 = vld [vmem:[%s350 + $0x90] sm:$0xff]
        %v599 = vld [vmem:[%s350 + $0xa0] sm:$0xff]
        %v600 = vld [vmem:[%s350 + $0xb0] sm:$0xff]
        %v601 = vld [vmem:[%s350 + $0xc0] sm:$0xff]
        %v602 = vld [vmem:[%s350 + $0xd0] sm:$0xff]
        %v603 = vld [vmem:[%s350 + $0xe0] sm:$0xff]
        %v604 = vld [vmem:[%s350 + $0xf0] sm:$0xff]
        %v621 = vunpack.c.l.b16 %v589
        %v622 = vunpack.c.h.b16 %v589
        %v623 = vunpack.c.l.b16 %v590
        %v624 = vunpack.c.h.b16 %v590
        %v625 = vunpack.c.l.b16 %v591
        %v626 = vunpack.c.h.b16 %v591
        %v627 = vunpack.c.l.b16 %v592
        %v628 = vunpack.c.h.b16 %v592
        %v629 = vunpack.c.l.b16 %v593
        %v630 = vunpack.c.h.b16 %v593
        %v631 = vunpack.c.l.b16 %v594
        %v632 = vunpack.c.h.b16 %v594
        %v633 = vunpack.c.l.b16 %v595
        %v634 = vunpack.c.h.b16 %v595
        %v635 = vunpack.c.l.b16 %v596
        %v636 = vunpack.c.h.b16 %v596
        %v637 = vunpack.c.l.b16 %v597
        %v638 = vunpack.c.h.b16 %v597
        %v639 = vunpack.c.l.b16 %v598
        %v640 = vunpack.c.h.b16 %v598
        %v641 = vunpack.c.l.b16 %v599
        %v642 = vunpack.c.h.b16 %v599
        %v643 = vunpack.c.l.b16 %v600
        %v644 = vunpack.c.h.b16 %v600
        %v645 = vunpack.c.l.b16 %v601
        %v646 = vunpack.c.h.b16 %v601
        %v647 = vunpack.c.l.b16 %v602
        %v648 = vunpack.c.h.b16 %v602
        %v649 = vunpack.c.l.b16 %v603
        %v650 = vunpack.c.h.b16 %v603
        %v651 = vunpack.c.l.b16 %v604
        %v652 = vunpack.c.h.b16 %v604
        %v653 = vpack.c.b16 %v623, %v621
        %v654 = vpack.c.b16 %v624, %v622
        %v655 = vpack.c.b16 %v627, %v625
        %v656 = vpack.c.b16 %v628, %v626
        %v657 = vpack.c.b16 %v631, %v629
        %v658 = vpack.c.b16 %v632, %v630
        %v659 = vpack.c.b16 %v635, %v633
        %v660 = vpack.c.b16 %v636, %v634
        %v661 = vpack.c.b16 %v639, %v637
        %v662 = vpack.c.b16 %v640, %v638
        %v663 = vpack.c.b16 %v643, %v641
        %v664 = vpack.c.b16 %v644, %v642
        %v665 = vpack.c.b16 %v647, %v645
        %v666 = vpack.c.b16 %v648, %v646
        %v667 = vpack.c.b16 %v651, %v649
        %v668 = vpack.c.b16 %v652, %v650
        %685 = vmatprep.subr.bf16.mxu0 %v654
        %686 = vmatpush1.bf16.msra.mxu0 %v653
        %687 = vmatprep.subr.bf16.mxu0 %v656
        %688 = vmatpush1.bf16.msra.mxu0 %v655
        %689 = vmatprep.subr.bf16.mxu0 %v658
        %690 = vmatpush1.bf16.msra.mxu0 %v657
        %691 = vmatprep.subr.bf16.mxu0 %v660
        %692 = vmatpush1.bf16.msra.mxu0 %v659
        %693 = vmatprep.subr.bf16.mxu0 %v662
        %694 = vmatpush1.bf16.msra.mxu0 %v661
        %695 = vmatprep.subr.bf16.mxu0 %v664
        %696 = vmatpush1.bf16.msra.mxu0 %v663
        %697 = vmatprep.subr.bf16.mxu0 %v666
        %698 = vmatpush1.bf16.msra.mxu0 %v665
        %699 = vmatprep.subr.bf16.mxu0 %v668
        %700 = vmatpush1.bf16.msra.mxu0 %v667
        %701 = vmatprep.subr.bf16.mxu0 0
        %702 = vmatpush1.bf16.msra.mxu0 0
        %703 = vmatprep.subr.bf16.mxu0 0
        %704 = vmatpush1.bf16.msra.mxu0 0
        %705 = vmatprep.subr.bf16.mxu0 0
        %706 = vmatpush1.bf16.msra.mxu0 0
        %707 = vmatprep.subr.bf16.mxu0 0
        %708 = vmatpush1.bf16.msra.mxu0 0
        %709 = vmatprep.subr.bf16.mxu0 0
        %710 = vmatpush1.bf16.msra.mxu0 0
        %711 = vmatprep.subr.bf16.mxu0 0
        %712 = vmatpush1.bf16.msra.mxu0 0
        %713 = vmatprep.subr.bf16.mxu0 0
        %714 = vmatpush1.bf16.msra.mxu0 0
        %715 = vmatprep.subr.bf16.mxu0 0
        %716 = vmatpush1.bf16.msra.mxu0 0
        %717 = vmatprep.mubr.bf16.mxu0 0
        %718 = vmatmul.mubr.bf16.gmra.mrb[0].mxu0 %v588
        %v719 = vpop.f32.mrb[0].mxu0
        %v720 = vadd.f32 0.0, %v719
        %v721 = vpop.f32.mrb[0].mxu0
        %v722 = vadd.f32 0.0, %v721
        %v723 = vpop.f32.mrb[0].mxu0
        %v724 = vadd.f32 0.0, %v723
        %v725 = vpop.f32.mrb[0].mxu0
        %v726 = vadd.f32 0.0, %v725
        %727 = vdwg.mxu0
        %v728 = vrot.slane %v720, 4
        %v729 = vmax.f32 %v720, %v728
        %v730 = vrot.slane %v729, 2
        %v731 = vmax.f32 %v729, %v730
        %v732 = vrot.slane %v731, 1
        %v733 = vmax.f32 %v731, %v732
        %v734 = vrot.slane %v722, 4
        %v735 = vmax.f32 %v722, %v734
        %v736 = vrot.slane %v735, 2
        %v737 = vmax.f32 %v735, %v736
        %v738 = vrot.slane %v737, 1
        %v739 = vmax.f32 %v737, %v738
        %v740 = vrot.slane %v724, 4
        %v741 = vmax.f32 %v724, %v740
        %v742 = vrot.slane %v741, 2
        %v743 = vmax.f32 %v741, %v742
        %v744 = vrot.slane %v743, 1
        %v745 = vmax.f32 %v743, %v744
        %v746 = vrot.slane %v726, 4
        %v747 = vmax.f32 %v726, %v746
        %v748 = vrot.slane %v747, 2
        %v749 = vmax.f32 %v747, %v748
        %v750 = vrot.slane %v749, 1
        %v751 = vmax.f32 %v749, %v750
        %v752 = vld [vmem:[%s384] sm:$0xf]
        %v757 = vcombine.low %v733, %v739
        %v759 = vunpack.c.l.s4 1983009808
        %v760 = vunpack.c.0.s8 %v759
        %v761 = vlaneseq
        %v762 = vshrl.u32 %v761, 7
        %v763 = vsub.s32 %v760, %v762
        %v764 = vrot.slane %v757, %v763
        %v765 = vcombine.low %v745, %v751
        %v767 = vunpack.c.l.s4 1983009808
        %v768 = vunpack.c.0.s8 %v767
        %v769 = vlaneseq
        %v770 = vshrl.u32 %v769, 7
        %v771 = vsub.s32 %v768, %v770
        %v772 = vrot.slane %v765, %v771
        %vm773 = vcmask 1044484
        %v774 = vsel %vm773, %v764, %v764
        %vm775 = vcmask 1046534
        %v776 = vsel %vm775, %v764, %v774
        %v777 = vrot.slane %v772, 7
        %vm778 = vcmask 1041409
        %v779 = vsel %vm778, %v777, %v776
        %vm780 = vcmask 1043459
        %v781 = vsel %vm780, %v777, %v779
        %vm782 = vcmask 1045509
        %v783 = vsel %vm782, %v777, %v781
        %vm784 = vcmask 1047559
        %v785 = vsel %vm784, %v777, %v783
        %v787 = vmax.f32 %v752, %v785
        %788 = vst [vmem:[%s384] sm:$0xf] %v787
        %v789 = vld [vmem:[%s350 + $0x8] sm:$0xff]
        %v790 = vld [vmem:[%s350 + $0x18] sm:$0xff]
        %v791 = vld [vmem:[%s350 + $0x28] sm:$0xff]
        %v792 = vld [vmem:[%s350 + $0x38] sm:$0xff]
        %v793 = vld [vmem:[%s350 + $0x48] sm:$0xff]
        %v794 = vld [vmem:[%s350 + $0x58] sm:$0xff]
        %v795 = vld [vmem:[%s350 + $0x68] sm:$0xff]
        %v796 = vld [vmem:[%s350 + $0x78] sm:$0xff]
        %v797 = vld [vmem:[%s350 + $0x88] sm:$0xff]
        %v798 = vld [vmem:[%s350 + $0x98] sm:$0xff]
        %v799 = vld [vmem:[%s350 + $0xa8] sm:$0xff]
        %v800 = vld [vmem:[%s350 + $0xb8] sm:$0xff]
        %v801 = vld [vmem:[%s350 + $0xc8] sm:$0xff]
        %v802 = vld [vmem:[%s350 + $0xd8] sm:$0xff]
        %v803 = vld [vmem:[%s350 + $0xe8] sm:$0xff]
        %v804 = vld [vmem:[%s350 + $0xf8] sm:$0xff]
        %v821 = vunpack.c.l.b16 %v789
        %v822 = vunpack.c.h.b16 %v789
        %v823 = vunpack.c.l.b16 %v790
        %v824 = vunpack.c.h.b16 %v790
        %v825 = vunpack.c.l.b16 %v791
        %v826 = vunpack.c.h.b16 %v791
        %v827 = vunpack.c.l.b16 %v792
        %v828 = vunpack.c.h.b16 %v792
        %v829 = vunpack.c.l.b16 %v793
        %v830 = vunpack.c.h.b16 %v793
        %v831 = vunpack.c.l.b16 %v794
        %v832 = vunpack.c.h.b16 %v794
        %v833 = vunpack.c.l.b16 %v795
        %v834 = vunpack.c.h.b16 %v795
        %v835 = vunpack.c.l.b16 %v796
        %v836 = vunpack.c.h.b16 %v796
        %v837 = vunpack.c.l.b16 %v797
        %v838 = vunpack.c.h.b16 %v797
        %v839 = vunpack.c.l.b16 %v798
        %v840 = vunpack.c.h.b16 %v798
        %v841 = vunpack.c.l.b16 %v799
        %v842 = vunpack.c.h.b16 %v799
        %v843 = vunpack.c.l.b16 %v800
        %v844 = vunpack.c.h.b16 %v800
        %v845 = vunpack.c.l.b16 %v801
        %v846 = vunpack.c.h.b16 %v801
        %v847 = vunpack.c.l.b16 %v802
        %v848 = vunpack.c.h.b16 %v802
        %v849 = vunpack.c.l.b16 %v803
        %v850 = vunpack.c.h.b16 %v803
        %v851 = vunpack.c.l.b16 %v804
        %v852 = vunpack.c.h.b16 %v804
        %v853 = vpack.c.b16 %v823, %v821
        %v854 = vpack.c.b16 %v824, %v822
        %v855 = vpack.c.b16 %v827, %v825
        %v856 = vpack.c.b16 %v828, %v826
        %v857 = vpack.c.b16 %v831, %v829
        %v858 = vpack.c.b16 %v832, %v830
        %v859 = vpack.c.b16 %v835, %v833
        %v860 = vpack.c.b16 %v836, %v834
        %v861 = vpack.c.b16 %v839, %v837
        %v862 = vpack.c.b16 %v840, %v838
        %v863 = vpack.c.b16 %v843, %v841
        %v864 = vpack.c.b16 %v844, %v842
        %v865 = vpack.c.b16 %v847, %v845
        %v866 = vpack.c.b16 %v848, %v846
        %v867 = vpack.c.b16 %v851, %v849
        %v868 = vpack.c.b16 %v852, %v850
        %885 = vmatprep.subr.bf16.mxu0 %v854
        %886 = vmatpush1.bf16.msra.mxu0 %v853
        %887 = vmatprep.subr.bf16.mxu0 %v856
        %888 = vmatpush1.bf16.msra.mxu0 %v855
        %889 = vmatprep.subr.bf16.mxu0 %v858
        %890 = vmatpush1.bf16.msra.mxu0 %v857
        %891 = vmatprep.subr.bf16.mxu0 %v860
        %892 = vmatpush1.bf16.msra.mxu0 %v859
        %893 = vmatprep.subr.bf16.mxu0 %v862
        %894 = vmatpush1.bf16.msra.mxu0 %v861
        %895 = vmatprep.subr.bf16.mxu0 %v864
        %896 = vmatpush1.bf16.msra.mxu0 %v863
        %897 = vmatprep.subr.bf16.mxu0 %v866
        %898 = vmatpush1.bf16.msra.mxu0 %v865
        %899 = vmatprep.subr.bf16.mxu0 %v868
        %900 = vmatpush1.bf16.msra.mxu0 %v867
        %901 = vmatprep.subr.bf16.mxu0 0
        %902 = vmatpush1.bf16.msra.mxu0 0
        %903 = vmatprep.subr.bf16.mxu0 0
        %904 = vmatpush1.bf16.msra.mxu0 0
        %905 = vmatprep.subr.bf16.mxu0 0
        %906 = vmatpush1.bf16.msra.mxu0 0
        %907 = vmatprep.subr.bf16.mxu0 0
        %908 = vmatpush1.bf16.msra.mxu0 0
        %909 = vmatprep.subr.bf16.mxu0 0
        %910 = vmatpush1.bf16.msra.mxu0 0
        %911 = vmatprep.subr.bf16.mxu0 0
        %912 = vmatpush1.bf16.msra.mxu0 0
        %913 = vmatprep.subr.bf16.mxu0 0
        %914 = vmatpush1.bf16.msra.mxu0 0
        %915 = vmatprep.subr.bf16.mxu0 0
        %916 = vmatpush1.bf16.msra.mxu0 0
        %917 = vmatprep.mubr.bf16.mxu0 0
        %918 = vmatmul.mubr.bf16.gmra.mrb[0].mxu0 %v588
        %v919 = vpop.f32.mrb[0].mxu0
        %v920 = vadd.f32 0.0, %v919
        %v921 = vpop.f32.mrb[0].mxu0
        %v922 = vadd.f32 0.0, %v921
        %v923 = vpop.f32.mrb[0].mxu0
        %v924 = vadd.f32 0.0, %v923
        %v925 = vpop.f32.mrb[0].mxu0
        %v926 = vadd.f32 0.0, %v925
        %927 = vdwg.mxu0
        %v928 = vrot.slane %v920, 4
        %v929 = vmax.f32 %v920, %v928
        %v930 = vrot.slane %v929, 2
        %v931 = vmax.f32 %v929, %v930
        %v932 = vrot.slane %v931, 1
        %v933 = vmax.f32 %v931, %v932
        %v934 = vrot.slane %v922, 4
        %v935 = vmax.f32 %v922, %v934
        %v936 = vrot.slane %v935, 2
        %v937 = vmax.f32 %v935, %v936
        %v938 = vrot.slane %v937, 1
        %v939 = vmax.f32 %v937, %v938
        %v940 = vrot.slane %v924, 4
        %v941 = vmax.f32 %v924, %v940
        %v942 = vrot.slane %v941, 2
        %v943 = vmax.f32 %v941, %v942
        %v944 = vrot.slane %v943, 1
        %v945 = vmax.f32 %v943, %v944
        %v946 = vrot.slane %v926, 4
        %v947 = vmax.f32 %v926, %v946
        %v948 = vrot.slane %v947, 2
        %v949 = vmax.f32 %v947, %v948
        %v950 = vrot.slane %v949, 1
        %v951 = vmax.f32 %v949, %v950
        %v952 = vld [vmem:[%s384 + $0x4] sm:$0xf]
        %v957 = vcombine.low %v933, %v939
        %v959 = vunpack.c.l.s4 1983009808
        %v960 = vunpack.c.0.s8 %v959
        %v961 = vlaneseq
        %v962 = vshrl.u32 %v961, 7
        %v963 = vsub.s32 %v960, %v962
        %v964 = vrot.slane %v957, %v963
        %v965 = vcombine.low %v945, %v951
        %v967 = vunpack.c.l.s4 1983009808
        %v968 = vunpack.c.0.s8 %v967
        %v969 = vlaneseq
        %v970 = vshrl.u32 %v969, 7
        %v971 = vsub.s32 %v968, %v970
        %v972 = vrot.slane %v965, %v971
        %v973 = vsel %vm773, %v964, %v964
        %v974 = vsel %vm775, %v964, %v973
        %v975 = vrot.slane %v972, 7
        %v976 = vsel %vm778, %v975, %v974
        %v977 = vsel %vm780, %v975, %v976
        %v978 = vsel %vm782, %v975, %v977
        %v979 = vsel %vm784, %v975, %v978
        %v981 = vmax.f32 %v952, %v979
        %982 = vst [vmem:[%s384 + $0x4] sm:$0xf] %v981
        // Predicated region
        $region69: #{tpu_custom_call.1} parent=47 // pred_check
          %p983 = pneg %p394
        $region70: #{tpu_custom_call.1} parent=47 // pred_check_branch
          %985 = sbr.rel (%p983) target = $region72
        $region71: #{tpu_custom_call.1} parent=47 // pred_region
          %v986 = vld [vmem:[%s384] sm:$0xff]
          %v987 = vld [vmem:[%s390] sm:$0xf]
          %v989 = vlaneseq
          %v990 = vshrl.u32 %v989, 7
          %v991 = vsub.s32 0, %v990
          %v992 = vrot.slane %v987, %v991
          %v993 = vlaneseq
          %v994 = vshrl.u32 %v993, 7
          %v995 = vsub.s32 1, %v994
          %v996 = vrot.slane %v987, %v995
          %v997 = vlaneseq
          %v998 = vshrl.u32 %v997, 7
          %v999 = vsub.s32 2, %v998
          %v1000 = vrot.slane %v987, %v999
          %v1001 = vlaneseq
          %v1002 = vshrl.u32 %v1001, 7
          %v1003 = vsub.s32 3, %v1002
          %v1004 = vrot.slane %v987, %v1003
          %v1005 = vcombine.low %v992, %v996
          %v1006 = vcombine.low %v1000, %v1004
          %v1008 = vunpack.c.l.s4 1983009808
          %v1009 = vunpack.c.0.s8 %v1008
          %v1010 = vlaneseq
          %v1011 = vshrl.u32 %v1010, 7
          %v1012 = vsub.s32 %v1009, %v1011
          %v1013 = vrot.slane %v1005, %v1012
          %v1015 = vunpack.c.l.s4 1983009808
          %v1016 = vunpack.c.0.s8 %v1015
          %v1017 = vlaneseq
          %v1018 = vshrl.u32 %v1017, 7
          %v1019 = vsub.s32 %v1016, %v1018
          %v1020 = vrot.slane %v1006, %v1019
          %v1021 = vcombine.low %v1013, %v1020
          %v1023 = vadd.f32 %v986, %v1021
          %vm1024 = vcmp.gt.f32.partialorder %v1023, 0.0
          %v1025 = vmul.f32 %v1023, 0.01
          %v1026 = vsel %vm1024, %v1023, %v1025
          %1027 = vst [vmem:[%s384] sm:$0xff] %v1026
        $region72: #{tpu_custom_call.1} parent=47 // pred_fallthru
          _
        %s1028 = sand.u32 %s219, 1
        %s1029 = scalar_lea.sflag [#allocation4], %s1028
        %s1030 = sand.u32 %s219, 1
        %s1031 = smul.addr %s1030, 8
        %s1032 = scalar_lea.vmem [#allocation10], %s1031
        // Predicated region
        $region73: #{tpu_custom_call.1} parent=47 // pred_check
          %p1033 = pneg %p229
        $region74: #{tpu_custom_call.1} parent=47 // pred_check_branch
          %1035 = sbr.rel (%p1033) target = $region76
        $region75: #{tpu_custom_call.1} parent=47 // pred_region
          %s1036 = smul.u32 4, %s32
          %s1038 = ssub.s32 128, 128
          %1039 = vsyncadd %s1029, %s1038
          %s1040 = smul.addr %s31, 8
          %s1041 = sadd.s32 %s1036, %s1040
          %s1042 = smul.addr %s1041, 32
          %s1043 = scalar_lea.hbm %s7, %s1042
          %s1045 = sshll.u32 %s1032, 4
          %s1046 = int_to_ptr.vmem [resolvable:$true] %s1045
          %1048 = dma.vmem_to_hbm [thread:$0]  %s1046, 128, %s1043, %s1029
        $region76: #{tpu_custom_call.1} parent=47 // pred_fallthru
          _
      $region48: #{tpu_custom_call.1} parent=5 // pred_fallthru
        _
      %p1049 = scmp.le.s32.totalorder 2, %s21
      // Predicated region
      $region77: #{tpu_custom_call.1} parent=5 // pred_check
        %p1050 = pneg %p1049
      $region78: #{tpu_custom_call.1} parent=5 // pred_check_branch
        %1052 = sbr.rel (%p1050) target = $region80
      $region79: #{tpu_custom_call.1} parent=5 // pred_region
        %s1053 = ssub.s32 %s21, 2
        // Predicated region
        $region81: #{tpu_custom_call.1} parent=79 // pred_check
          %p1054 = pneg %p235
        $region82: #{tpu_custom_call.1} parent=79 // pred_check_branch
          %1056 = sbr.rel (%p1054) target = $region84
        $region83: #{tpu_custom_call.1} parent=79 // pred_region
          %s1057 = sand.u32 %s220, 1
          %s1058 = scalar_lea.sflag [#allocation4], %s1057
          %s1059 = sand.u32 %s220, 1
          %s1060 = smul.addr %s1059, 8
          %s1061 = scalar_lea.vmem [#allocation10], %s1060
          %1062 = dma.done %s1058, 128
        $region84: #{tpu_custom_call.1} parent=79 // pred_fallthru
          _
      $region80: #{tpu_custom_call.1} parent=5 // pred_fallthru
        _
    $region6: #{tpu_custom_call.1} parent=1 // loop_footer
      %s25 = sadd.s32 1, %s21
    $region7: #{tpu_custom_call.1} parent=1 // loop_footer_branch
      %20 = sbr.rel target = $region3
    $region8: #{tpu_custom_call.1} parent=1 // loop_exit
      _
    %1063 = vsyncpa [#allocation3], 1
    %s1064 = scalar_lea.sflag [#allocation3], 1
    %1065 = vsyncpa %s1064, 1
    %1066 = vsyncpa [#allocation6], 1
    %1067 = vsyncpa [#allocation9], 1
    %s1068 = scalar_lea.sflag [#allocation9], 1
    %1069 = vsyncpa %s1068, 1
    %1070 = vsyncpa [#allocation4], 1
    %s1071 = scalar_lea.sflag [#allocation4], 1
    %1072 = vsyncpa %s1071, 1

</llo_original>
